<compile_context>
chip_gen: v7x
topology: tpu7x:2x2x1
jax: 0.10.0
libtpu: 0.0.40
codegen_flags: <defaults>
</compile_context>

<pallas_src>
import jax
import jax.numpy as jnp
from jax.experimental import pallas as pl
from jax.experimental.pallas import tpu as pltpu


def _round_up(a, b):
    return (a + b - 1) // b * b


def _deeper_net_kernel(x_ref,
                       w1_ref, b1_ref,
                       w2_ref, b2_ref,
                       w3_ref, b3_ref,
                       wl_ref, bl_ref,
                       o_ref):
    # Transposed layout: features on sublanes, batch on lanes (lane-dense).
    x = x_ref[...]                       # (in_dim, TILE_B) f32
    w1 = w1_ref[...]                     # (h1, in_dim) f32, in_dim tiny (2)
    in_dim = w1.shape[1]

    # fc1 + ReLU: K == in_dim == 2 -> unrolled FMA on the VPU, skip the MXU.
    h = b1_ref[...]                      # (h1, 1) broadcasts over lanes
    for k in range(in_dim):
        h = h + w1[:, k:k + 1] * x[k:k + 1, :]
    h = jnp.maximum(h, 0.0)

    # fc2 + ReLU: bf16 operands on the MXU, f32 accumulation.
    h = jnp.dot(w2_ref[...], h.astype(jnp.bfloat16),
                preferred_element_type=jnp.float32) + b2_ref[...]
    h = jnp.maximum(h, 0.0)

    # fc3 + ReLU
    h = jnp.dot(w3_ref[...], h.astype(jnp.bfloat16),
                preferred_element_type=jnp.float32) + b3_ref[...]
    h = jnp.maximum(h, 0.0)

    # fc_last
    logits = jnp.dot(wl_ref[...], h.astype(jnp.bfloat16),
                     preferred_element_type=jnp.float32) + bl_ref[...]
    # logits: (m_ary, TILE_B)

    # LogSoftmax over the class axis (sublane axis, m_ary rows): cross-sublane
    # max/sum go to the XLU slot, exp/log to the EUP slot.
    m = jnp.max(logits, axis=0, keepdims=True)
    z = logits - m
    s = jnp.sum(jnp.exp(z), axis=0, keepdims=True)
    o_ref[...] = z - jnp.log(s)


def _prep_params(params):
    """Reshape biases to column vectors; cast MXU-side weights to bf16 once."""
    (w1, b1, w2, b2, w3, b3, wl, bl) = params
    f32, bf16 = jnp.float32, jnp.bfloat16
    return (w1.astype(f32), b1.reshape(-1, 1).astype(f32),
            w2.astype(bf16), b2.reshape(-1, 1).astype(f32),
            w3.astype(bf16), b3.reshape(-1, 1).astype(f32),
            wl.astype(bf16), bl.reshape(-1, 1).astype(f32))


def _choose_tiling(batch, tile_b):
    """Lane-aligned tile with an even grid of >= 2 steps (v7x megacore)."""
    lane = 128
    steps = max(2, pl.cdiv(max(batch, 1), tile_b))
    if steps % 2:
        steps += 1
    tile = _round_up(pl.cdiv(max(batch, 1), steps), lane)
    return tile, steps, tile * steps


def _forward_core(x_t, params, tile, steps):
    """x_t: (in_dim, b_pad) f32 with b_pad == tile * steps. Returns (m_ary, b_pad)."""
    (w1, b1c, w2, b2c, w3, b3c, wl, blc) = _prep_params(params)
    in_dim, b_pad = x_t.shape
    h1, h2, h3, m_ary = w1.shape[0], w2.shape[0], w3.shape[0], wl.shape[0]
    assert b_pad == tile * steps

    def resident(shape):
        # Constant index_map -> block stays VMEM-resident across grid steps.
        return pl.BlockSpec(shape, lambda i: (0, 0))

    flops = 2 * b_pad * (in_dim * h1 + h1 * h2 + h2 * h3 + h3 * m_ary)
    transcendentals = b_pad * (m_ary + 1)                  # exp per class + log
    bytes_accessed = (4 * (x_t.size + b_pad * m_ary)       # f32 activations
                      + 4 * (w1.size + h1 + h2 + h3 + m_ary)
                      + 2 * (w2.size + w3.size + wl.size))  # bf16 weights

    return pl.pallas_call(
        _deeper_net_kernel,
        out_shape=jax.ShapeDtypeStruct((m_ary, b_pad), jnp.float32),
        grid=(steps,),
        in_specs=[
            pl.BlockSpec((in_dim, tile), lambda i: (0, i)),   # x tile, lane-dense
            resident((h1, in_dim)), resident((h1, 1)),
            resident((h2, h1)), resident((h2, 1)),
            resident((h3, h2)), resident((h3, 1)),
            resident((m_ary, h3)), resident((m_ary, 1)),
        ],
        out_specs=pl.BlockSpec((m_ary, tile), lambda i: (0, i)),
        compiler_params=pltpu.CompilerParams(
            dimension_semantics=("parallel",)),
        cost_estimate=pl.CostEstimate(
            flops=flops,
            transcendentals=transcendentals,
            bytes_accessed=bytes_accessed),
    )(x_t, w1, b1c, w2, b2c, w3, b3c, wl, blc)


def deeper_net_forward_t(x_t, params, *, tile_b=8192):
    """Fast path: transposed layout end-to-end.  x_t: (in_dim, B) -> (m_ary, B).
    Zero wrapper-side plumbing when B == tile*steps (lane-aligned batch)."""
    in_dim, batch = x_t.shape
    tile, steps, b_pad = _choose_tiling(batch, tile_b)
    x_t = x_t.astype(jnp.float32)
    if b_pad != batch:
        x_t = jnp.zeros((in_dim, b_pad), jnp.float32).at[:, :batch].set(x_t)
    out_t = _forward_core(x_t, params, tile, steps)
    return out_t if b_pad == batch else out_t[:, :batch]


def deeper_net_forward(x, params, *, tile_b=8192):
    """PyTorch-layout drop-in: x (B, in_dim) f32 -> log-probs (B, m_ary)."""
    batch, in_dim = x.shape
    tile, steps, b_pad = _choose_tiling(batch, tile_b)
    # One fused pad+transpose on the way in; slice+transpose on the way out.
    x_t = jnp.zeros((in_dim, b_pad), jnp.float32).at[:, :batch].set(
        x.astype(jnp.float32).T)
    out_t = _forward_core(x_t, params, tile, steps)
    return out_t[:, :batch].T


def init_params(key, in_dim=2, h1=32, h2=32, h3=32, m_ary=4):
    ks = jax.random.split(key, 8)

    def lin(kw, kb, fan_in, fan_out):
        # PyTorch-Linear-like uniform(-1/sqrt(fan_in), 1/sqrt(fan_in)); W is (out, in).
        bound = 1.0 / jnp.sqrt(jnp.float32(fan_in))
        w = jax.random.uniform(kw, (fan_out, fan_in), jnp.float32, -bound, bound)
        b = jax.random.uniform(kb, (fan_out,), jnp.float32, -bound, bound)
        return w, b

    w1, b1 = lin(ks[0], ks[1], in_dim, h1)
    w2, b2 = lin(ks[2], ks[3], h1, h2)
    w3, b3 = lin(ks[4], ks[5], h2, h3)
    wl, bl = lin(ks[6], ks[7], h3, m_ary)
    return (w1, b1, w2, b2, w3, b3, wl, bl)


def reference_forward(x, params):
    (w1, b1, w2, b2, w3, b3, wl, bl) = params
    h = jnp.maximum(x @ w1.T + b1, 0.0)
    h = jnp.maximum(h @ w2.T + b2, 0.0)
    h = jnp.maximum(h @ w3.T + b3, 0.0)
    logits = h @ wl.T + bl
    return jax.nn.log_softmax(logits, axis=1)


if __name__ == "__main__":
    key = jax.random.PRNGKey(0)
    k_p, k1, k2, k3 = jax.random.split(key, 4)

    in_dim, h1, h2, h3, m_ary = 2, 32, 32, 32, 4
    params = init_params(k_p, in_dim, h1, h2, h3, m_ary)

    # bf16 MXU operands -> loosen tolerances vs the f32 XLA reference.
    ATOL = RTOL = 5e-2

    # (1) PyTorch-layout drop-in, tiny batch (padded to a 2x128-lane grid).
    B1 = 8
    x1 = jax.random.normal(k1, (B1, in_dim), dtype=jnp.float32)
    out1 = jax.block_until_ready(deeper_net_forward(x1, params))
    ref1 = reference_forward(x1, params)
    assert out1.shape == (B1, m_ary)
    assert jnp.allclose(out1, ref1, atol=ATOL, rtol=RTOL)

    # (2) PyTorch-layout, ragged batch exercising padding + 2-step grid tiling.
    B2 = 300
    x2 = jax.random.normal(k2, (B2, in_dim), dtype=jnp.float32)
    out2 = jax.block_until_ready(deeper_net_forward(x2, params))
    ref2 = reference_forward(x2, params)
    assert out2.shape == (B2, m_ary)
    assert jnp.allclose(out2, ref2, atol=ATOL, rtol=RTOL)

    # (3) Transposed fast path with a lane-aligned batch: zero wrapper plumbing
    #     (no pad, no transpose), two parallel grid steps.
    B3 = 512
    x3 = jax.random.normal(k3, (B3, in_dim), dtype=jnp.float32)
    out3_t = jax.block_until_ready(deeper_net_forward_t(x3.T, params))
    ref3 = reference_forward(x3, params)
    assert out3_t.shape == (m_ary, B3)
    assert jnp.allclose(out3_t.T, ref3, atol=ATOL, rtol=RTOL)

    print("KERNEL_OK")
</pallas_src>

<mosaic_0001>
module attributes {stable_mosaic.version = 11 : i64} {
  func.func @_deeper_net_kernel(%arg0: i32, %arg1: memref<2x128xf32, #tpu.memory_space<vmem>>, %arg2: memref<32x2xf32, #tpu.memory_space<vmem>>, %arg3: memref<32x1xf32, #tpu.memory_space<vmem>>, %arg4: memref<32x32xbf16, #tpu.memory_space<vmem>>, %arg5: memref<32x1xf32, #tpu.memory_space<vmem>>, %arg6: memref<32x32xbf16, #tpu.memory_space<vmem>>, %arg7: memref<32x1xf32, #tpu.memory_space<vmem>>, %arg8: memref<4x32xbf16, #tpu.memory_space<vmem>>, %arg9: memref<4x1xf32, #tpu.memory_space<vmem>>, %arg10: memref<4x128xf32, #tpu.memory_space<vmem>>) attributes {dimension_semantics = [#tpu.dimension_semantics<parallel>], iteration_bounds = array<i64: 2>, scalar_prefetch = 0 : i64, scratch_operands = 0 : i64, tpu.core_type = #tpu.core_type<tc>, window_params = [{transform_indices = @transform_0, window_bounds = array<i64: 2, 128>}, {pipeline_mode = #tpu.pipeline_mode<synchronous>, transform_indices = @transform_1, window_bounds = array<i64: 32, 2>}, {pipeline_mode = #tpu.pipeline_mode<synchronous>, transform_indices = @transform_2, window_bounds = array<i64: 32, 1>}, {pipeline_mode = #tpu.pipeline_mode<synchronous>, transform_indices = @transform_3, window_bounds = array<i64: 32, 32>}, {pipeline_mode = #tpu.pipeline_mode<synchronous>, transform_indices = @transform_4, window_bounds = array<i64: 32, 1>}, {pipeline_mode = #tpu.pipeline_mode<synchronous>, transform_indices = @transform_5, window_bounds = array<i64: 32, 32>}, {pipeline_mode = #tpu.pipeline_mode<synchronous>, transform_indices = @transform_6, window_bounds = array<i64: 32, 1>}, {pipeline_mode = #tpu.pipeline_mode<synchronous>, transform_indices = @transform_7, window_bounds = array<i64: 4, 32>}, {pipeline_mode = #tpu.pipeline_mode<synchronous>, transform_indices = @transform_8, window_bounds = array<i64: 4, 1>}, {transform_indices = @transform_9, window_bounds = array<i64: 4, 128>}]} {
    %c0 = arith.constant 0 : index
    %c0_0 = arith.constant 0 : index
    %0 = vector.load %arg1[%c0, %c0_0] : memref<2x128xf32, #tpu.memory_space<vmem>>, vector<2x128xf32>
    %c0_1 = arith.constant 0 : index
    %c0_2 = arith.constant 0 : index
    %1 = vector.load %arg2[%c0_1, %c0_2] : memref<32x2xf32, #tpu.memory_space<vmem>>, vector<32x2xf32>
    %c0_3 = arith.constant 0 : index
    %c0_4 = arith.constant 0 : index
    %2 = vector.load %arg3[%c0_3, %c0_4] : memref<32x1xf32, #tpu.memory_space<vmem>>, vector<32x1xf32>
    %3 = vector.extract_strided_slice %1 {offsets = [0, 0], sizes = [32, 1], strides = [1, 1]} : vector<32x2xf32> to vector<32x1xf32>
    %4 = vector.extract_strided_slice %0 {offsets = [0, 0], sizes = [1, 128], strides = [1, 1]} : vector<2x128xf32> to vector<1x128xf32>
    %5 = vector.broadcast %3 : vector<32x1xf32> to vector<32x128xf32>
    %6 = vector.broadcast %4 : vector<1x128xf32> to vector<32x128xf32>
    %7 = arith.mulf %5, %6 : vector<32x128xf32>
    %8 = vector.broadcast %2 : vector<32x1xf32> to vector<32x128xf32>
    %9 = arith.addf %8, %7 : vector<32x128xf32>
    %10 = vector.extract_strided_slice %1 {offsets = [0, 1], sizes = [32, 1], strides = [1, 1]} : vector<32x2xf32> to vector<32x1xf32>
    %11 = vector.extract_strided_slice %0 {offsets = [1, 0], sizes = [1, 128], strides = [1, 1]} : vector<2x128xf32> to vector<1x128xf32>
    %12 = vector.broadcast %10 : vector<32x1xf32> to vector<32x128xf32>
    %13 = vector.broadcast %11 : vector<1x128xf32> to vector<32x128xf32>
    %14 = arith.mulf %12, %13 : vector<32x128xf32>
    %15 = arith.addf %9, %14 : vector<32x128xf32>
    %cst = arith.constant 0.000000e+00 : f32
    %16 = vector.broadcast %cst : f32 to vector<32x128xf32>
    %17 = arith.maximumf %15, %16 : vector<32x128xf32>
    %c0_5 = arith.constant 0 : index
    %c0_6 = arith.constant 0 : index
    %18 = vector.load %arg4[%c0_5, %c0_6] : memref<32x32xbf16, #tpu.memory_space<vmem>>, vector<32x32xbf16>
    %19 = arith.truncf %17 : vector<32x128xf32> to vector<32x128xbf16>
    %cst_7 = arith.constant dense<0.000000e+00> : vector<32x128xf32>
    %20 = tpu.matmul %18, %19, %cst_7 {dimension_numbers = #tpu.dot_dimension_numbers<[1], [0], [0], [1], [0, 0, 1, 1], [], []>} : vector<32x32xbf16>, vector<32x128xbf16>, vector<32x128xf32> -> vector<32x128xf32>
    %c0_8 = arith.constant 0 : index
    %c0_9 = arith.constant 0 : index
    %21 = vector.load %arg5[%c0_8, %c0_9] : memref<32x1xf32, #tpu.memory_space<vmem>>, vector<32x1xf32>
    %22 = vector.broadcast %21 : vector<32x1xf32> to vector<32x128xf32>
    %23 = arith.addf %20, %22 : vector<32x128xf32>
    %cst_10 = arith.constant 0.000000e+00 : f32
    %24 = vector.broadcast %cst_10 : f32 to vector<32x128xf32>
    %25 = arith.maximumf %23, %24 : vector<32x128xf32>
    %c0_11 = arith.constant 0 : index
    %c0_12 = arith.constant 0 : index
    %26 = vector.load %arg6[%c0_11, %c0_12] : memref<32x32xbf16, #tpu.memory_space<vmem>>, vector<32x32xbf16>
    %27 = arith.truncf %25 : vector<32x128xf32> to vector<32x128xbf16>
    %cst_13 = arith.constant dense<0.000000e+00> : vector<32x128xf32>
    %28 = tpu.matmul %26, %27, %cst_13 {dimension_numbers = #tpu.dot_dimension_numbers<[1], [0], [0], [1], [0, 0, 1, 1], [], []>} : vector<32x32xbf16>, vector<32x128xbf16>, vector<32x128xf32> -> vector<32x128xf32>
    %c0_14 = arith.constant 0 : index
    %c0_15 = arith.constant 0 : index
    %29 = vector.load %arg7[%c0_14, %c0_15] : memref<32x1xf32, #tpu.memory_space<vmem>>, vector<32x1xf32>
    %30 = vector.broadcast %29 : vector<32x1xf32> to vector<32x128xf32>
    %31 = arith.addf %28, %30 : vector<32x128xf32>
    %cst_16 = arith.constant 0.000000e+00 : f32
    %32 = vector.broadcast %cst_16 : f32 to vector<32x128xf32>
    %33 = arith.maximumf %31, %32 : vector<32x128xf32>
    %c0_17 = arith.constant 0 : index
    %c0_18 = arith.constant 0 : index
    %34 = vector.load %arg8[%c0_17, %c0_18] : memref<4x32xbf16, #tpu.memory_space<vmem>>, vector<4x32xbf16>
    %35 = arith.truncf %33 : vector<32x128xf32> to vector<32x128xbf16>
    %cst_19 = arith.constant dense<0.000000e+00> : vector<4x128xf32>
    %36 = tpu.matmul %34, %35, %cst_19 {dimension_numbers = #tpu.dot_dimension_numbers<[1], [0], [0], [1], [0, 0, 1, 1], [], []>} : vector<4x32xbf16>, vector<32x128xbf16>, vector<4x128xf32> -> vector<4x128xf32>
    %c0_20 = arith.constant 0 : index
    %c0_21 = arith.constant 0 : index
    %37 = vector.load %arg9[%c0_20, %c0_21] : memref<4x1xf32, #tpu.memory_space<vmem>>, vector<4x1xf32>
    %38 = vector.broadcast %37 : vector<4x1xf32> to vector<4x128xf32>
    %39 = arith.addf %36, %38 : vector<4x128xf32>
    %cst_22 = arith.constant dense<0xFF800000> : vector<128xf32>
    %40 = vector.multi_reduction <maximumf>, %39, %cst_22 [0] : vector<4x128xf32> to vector<128xf32>
    %41 = vector.shape_cast %40 : vector<128xf32> to vector<1x128xf32>
    %42 = vector.broadcast %41 : vector<1x128xf32> to vector<4x128xf32>
    %43 = arith.subf %39, %42 : vector<4x128xf32>
    %44 = math.exp %43 : vector<4x128xf32>
    %cst_23 = arith.constant dense<0.000000e+00> : vector<128xf32>
    %45 = vector.multi_reduction <add>, %44, %cst_23 [0] : vector<4x128xf32> to vector<128xf32>
    %46 = vector.shape_cast %45 : vector<128xf32> to vector<1x128xf32>
    %47 = math.log %46 : vector<1x128xf32>
    %48 = vector.broadcast %47 : vector<1x128xf32> to vector<4x128xf32>
    %49 = arith.subf %43, %48 : vector<4x128xf32>
    %c0_24 = arith.constant 0 : index
    %c0_25 = arith.constant 0 : index
    %50 = vector.load %arg10[%c0_24, %c0_25] : memref<4x128xf32, #tpu.memory_space<vmem>>, vector<4x128xf32>
    tpu.vector_store %arg10[%c0_24, %c0_25], %49 {strides = array<i32>} : memref<4x128xf32, #tpu.memory_space<vmem>>, vector<4x128xf32>,
    return
  }
  func.func @transform_0(%arg0: i32) -> (i32, i32) {
    %c0_i32 = arith.constant 0 : i32
    %c0_i32_0 = arith.constant 0 : i32
    return %c0_i32, %arg0 : i32, i32
  }
  func.func @transform_1(%arg0: i32) -> (i32, i32) {
    %c0_i32 = arith.constant 0 : i32
    %c0_i32_0 = arith.constant 0 : i32
    %c0_i32_1 = arith.constant 0 : i32
    return %c0_i32, %c0_i32_0 : i32, i32
  }
  func.func @transform_2(%arg0: i32) -> (i32, i32) {
    %c0_i32 = arith.constant 0 : i32
    %c0_i32_0 = arith.constant 0 : i32
    %c0_i32_1 = arith.constant 0 : i32
    return %c0_i32, %c0_i32_0 : i32, i32
  }
  func.func @transform_3(%arg0: i32) -> (i32, i32) {
    %c0_i32 = arith.constant 0 : i32
    %c0_i32_0 = arith.constant 0 : i32
    %c0_i32_1 = arith.constant 0 : i32
    return %c0_i32, %c0_i32_0 : i32, i32
  }
  func.func @transform_4(%arg0: i32) -> (i32, i32) {
    %c0_i32 = arith.constant 0 : i32
    %c0_i32_0 = arith.constant 0 : i32
    %c0_i32_1 = arith.constant 0 : i32
    return %c0_i32, %c0_i32_0 : i32, i32
  }
  func.func @transform_5(%arg0: i32) -> (i32, i32) {
    %c0_i32 = arith.constant 0 : i32
    %c0_i32_0 = arith.constant 0 : i32
    %c0_i32_1 = arith.constant 0 : i32
    return %c0_i32, %c0_i32_0 : i32, i32
  }
  func.func @transform_6(%arg0: i32) -> (i32, i32) {
    %c0_i32 = arith.constant 0 : i32
    %c0_i32_0 = arith.constant 0 : i32
    %c0_i32_1 = arith.constant 0 : i32
    return %c0_i32, %c0_i32_0 : i32, i32
  }
  func.func @transform_7(%arg0: i32) -> (i32, i32) {
    %c0_i32 = arith.constant 0 : i32
    %c0_i32_0 = arith.constant 0 : i32
    %c0_i32_1 = arith.constant 0 : i32
    return %c0_i32, %c0_i32_0 : i32, i32
  }
  func.func @transform_8(%arg0: i32) -> (i32, i32) {
    %c0_i32 = arith.constant 0 : i32
    %c0_i32_0 = arith.constant 0 : i32
    %c0_i32_1 = arith.constant 0 : i32
    return %c0_i32, %c0_i32_0 : i32, i32
  }
  func.func @transform_9(%arg0: i32) -> (i32, i32) {
    %c0_i32 = arith.constant 0 : i32
    %c0_i32_0 = arith.constant 0 : i32
    return %c0_i32, %arg0 : i32, i32
  }
}

</mosaic_0001>

<llo_original>
// kernel: tpu_custom_call.1
$region0: #{tpu_custom_call.1}
  #allocation0 [shape = 'u32[]', space=smem, size = 0x4, offset = 0x4, fixed_abs, tag = 'smem constant byte address 0x4 - core index']
  #allocation1 [shape = 'u32[144,128]{1,0:T(1,128)}', space=vmem, size = 0x12000, scoped, tag = 'internal scratch']
  %s0 = inlined_call_operand.vmem [shape: f32[2,256], index: 0, kind: input, shape index: {}]
  %s1 = inlined_call_operand.vmem [shape: f32[32,2], index: 1, kind: input, shape index: {}]
  %s2 = inlined_call_operand.vmem [shape: f32[32,1], index: 2, kind: input, shape index: {}]
  %s3 = inlined_call_operand.vmem [shape: bf16[32,32], index: 3, kind: input, shape index: {}]
  %s4 = inlined_call_operand.vmem [shape: f32[32,1], index: 4, kind: input, shape index: {}]
  %s5 = inlined_call_operand.vmem [shape: bf16[32,32], index: 5, kind: input, shape index: {}]
  %s6 = inlined_call_operand.vmem [shape: f32[32,1], index: 6, kind: input, shape index: {}]
  %s7 = inlined_call_operand.vmem [shape: bf16[4,32], index: 7, kind: input, shape index: {}]
  %s8 = inlined_call_operand.vmem [shape: f32[4,1], index: 8, kind: input, shape index: {}]
  %s9 = inlined_call_operand.hbm [shape: f32[4,256], index: 9, kind: output, shape index: {}]
  %s10 = sld [smem:[#allocation0]]
  $region69: #{tpu_custom_call.1} parent=0
    _
  %s12 = ssub.s32 1, %s10
  %s13 = scalar_select 0, %s12, %s10
  $region1: #{tpu_custom_call.1} parent=0
    #allocation2 [shape = 'u8[4096]{0}', space=vmem, size = 0x1000, scoped, tag = 'output window, operand 0']
    #allocation3 [shape = 's32[2]{0}', space=sflag, size = 0x8, scoped, tag = 'scoped memory for tpu_custom_call.1']
    %14 = vsyncpa [#allocation3], 0
    %s15 = scalar_lea.sflag [#allocation3], 1
    %16 = vsyncpa %s15, 0
    loop: start=0, step=1, limit=4
    $region2: #{tpu_custom_call.1} parent=1 // loop_pre_header
      _
    $region3: #{tpu_custom_call.1} parent=1 // loop_header
      %s18 = sphi 0, %s22
      %p19 = scmp.ge.s32.totalorder %s18, 4
      %s28 = sphi 0, %s30
      %s31 = sphi 0, %s28
      %s32 = sphi 0, %s31
      %s48 = sphi 0, %s32
      %s52 = sphi 0, %s52
      %s54 = sphi 0, %s52
      %s55 = sphi 0, %s54
      %s69 = sphi 0, %s55
      %s73 = sphi 0, %s73
      %s75 = sphi 0, %s73
      %s76 = sphi 0, %s75
      %s90 = sphi 0, %s76
      %s94 = sphi 0, %s94
      %s96 = sphi 0, %s94
      %s97 = sphi 0, %s96
      %s111 = sphi 0, %s97
      %s115 = sphi 0, %s115
      %s117 = sphi 0, %s115
      %s118 = sphi 0, %s117
      %s132 = sphi 0, %s118
      %s136 = sphi 0, %s136
      %s138 = sphi 0, %s136
      %s139 = sphi 0, %s138
      %s153 = sphi 0, %s139
      %s157 = sphi 0, %s157
      %s159 = sphi 0, %s157
      %s160 = sphi 0, %s159
      %s174 = sphi 0, %s160
      %s178 = sphi 0, %s178
      %s180 = sphi 0, %s178
      %s181 = sphi 0, %s180
      %s195 = sphi 0, %s181
      %s199 = sphi 0, %s199
      %s201 = sphi 0, %s199
      %s202 = sphi 0, %s201
      %s216 = sphi 0, %s202
      %s222 = sphi 0, %s224
      %s225 = sphi 0, %s222
      %s226 = sphi 0, %s225
      %s242 = sphi 0, %s226
    $region4: #{tpu_custom_call.1} parent=1 // loop_header_branch
      %21 = sbr.rel (%p19) target = $region8
    $region5: #{tpu_custom_call.1} parent=1 // loop_body
      %s23 = ssub.s32 %s18, 1
      %s24 = ssub.s32 %s18, 2
      %s25 = sadd.s32 %s18, 1
      %s26 = ssub.s32 %s18, %s25
      %p27 = scmp.eq.s32.totalorder %s26, 0
      %s29 = sadd.s32 %s28, 1
      %s30 = scalar_select %p27, %s28, %s29
      %p33 = pneg %p27
      %p34 = scmp.eq.s32.totalorder %s18, 1
      %p35 = por %p33, %p34
      %p36 = scmp.ne.s32.totalorder %s28, %s31
      %p37 = scmp.eq.s32.totalorder %s18, 0
      %p38 = por %p36, %p37
      %p39 = scmp.ne.s32.totalorder %s28, %s31
      %p40 = scmp.eq.s32.totalorder %s23, 1
      %p41 = por %p39, %p40
      %p42 = scmp.ne.s32.totalorder %s31, %s32
      %p43 = scmp.eq.s32.totalorder %s23, 0
      %p44 = por %p42, %p43
      %p45 = scmp.ne.s32.totalorder %s31, %s32
      %p46 = scmp.eq.s32.totalorder %s24, 1
      %p47 = por %p45, %p46
      %p49 = scmp.ne.s32.totalorder %s32, %s48
      %p50 = scmp.eq.s32.totalorder %s24, 0
      %p51 = por %p49, %p50
      %s53 = sadd.s32 %s52, 1
      %p56 = scmp.eq.s32.totalorder %s18, 1
      %p57 = scmp.ne.s32.totalorder %s52, %s54
      %p58 = scmp.eq.s32.totalorder %s18, 0
      %p59 = por %p57, %p58
      %p60 = scmp.ne.s32.totalorder %s52, %s54
      %p61 = scmp.eq.s32.totalorder %s23, 1
      %p62 = por %p60, %p61
      %p63 = scmp.ne.s32.totalorder %s54, %s55
      %p64 = scmp.eq.s32.totalorder %s23, 0
      %p65 = por %p63, %p64
      %p66 = scmp.ne.s32.totalorder %s54, %s55
      %p67 = scmp.eq.s32.totalorder %s24, 1
      %p68 = por %p66, %p67
      %p70 = scmp.ne.s32.totalorder %s55, %s69
      %p71 = scmp.eq.s32.totalorder %s24, 0
      %p72 = por %p70, %p71
      %s74 = sadd.s32 %s73, 1
      %p77 = scmp.eq.s32.totalorder %s18, 1
      %p78 = scmp.ne.s32.totalorder %s73, %s75
      %p79 = scmp.eq.s32.totalorder %s18, 0
      %p80 = por %p78, %p79
      %p81 = scmp.ne.s32.totalorder %s73, %s75
      %p82 = scmp.eq.s32.totalorder %s23, 1
      %p83 = por %p81, %p82
      %p84 = scmp.ne.s32.totalorder %s75, %s76
      %p85 = scmp.eq.s32.totalorder %s23, 0
      %p86 = por %p84, %p85
      %p87 = scmp.ne.s32.totalorder %s75, %s76
      %p88 = scmp.eq.s32.totalorder %s24, 1
      %p89 = por %p87, %p88
      %p91 = scmp.ne.s32.totalorder %s76, %s90
      %p92 = scmp.eq.s32.totalorder %s24, 0
      %p93 = por %p91, %p92
      %s95 = sadd.s32 %s94, 1
      %p98 = scmp.eq.s32.totalorder %s18, 1
      %p99 = scmp.ne.s32.totalorder %s94, %s96
      %p100 = scmp.eq.s32.totalorder %s18, 0
      %p101 = por %p99, %p100
      %p102 = scmp.ne.s32.totalorder %s94, %s96
      %p103 = scmp.eq.s32.totalorder %s23, 1
      %p104 = por %p102, %p103
      %p105 = scmp.ne.s32.totalorder %s96, %s97
      %p106 = scmp.eq.s32.totalorder %s23, 0
      %p107 = por %p105, %p106
      %p108 = scmp.ne.s32.totalorder %s96, %s97
      %p109 = scmp.eq.s32.totalorder %s24, 1
      %p110 = por %p108, %p109
      %p112 = scmp.ne.s32.totalorder %s97, %s111
      %p113 = scmp.eq.s32.totalorder %s24, 0
      %p114 = por %p112, %p113
      %s116 = sadd.s32 %s115, 1
      %p119 = scmp.eq.s32.totalorder %s18, 1
      %p120 = scmp.ne.s32.totalorder %s115, %s117
      %p121 = scmp.eq.s32.totalorder %s18, 0
      %p122 = por %p120, %p121
      %p123 = scmp.ne.s32.totalorder %s115, %s117
      %p124 = scmp.eq.s32.totalorder %s23, 1
      %p125 = por %p123, %p124
      %p126 = scmp.ne.s32.totalorder %s117, %s118
      %p127 = scmp.eq.s32.totalorder %s23, 0
      %p128 = por %p126, %p127
      %p129 = scmp.ne.s32.totalorder %s117, %s118
      %p130 = scmp.eq.s32.totalorder %s24, 1
      %p131 = por %p129, %p130
      %p133 = scmp.ne.s32.totalorder %s118, %s132
      %p134 = scmp.eq.s32.totalorder %s24, 0
      %p135 = por %p133, %p134
      %s137 = sadd.s32 %s136, 1
      %p140 = scmp.eq.s32.totalorder %s18, 1
      %p141 = scmp.ne.s32.totalorder %s136, %s138
      %p142 = scmp.eq.s32.totalorder %s18, 0
      %p143 = por %p141, %p142
      %p144 = scmp.ne.s32.totalorder %s136, %s138
      %p145 = scmp.eq.s32.totalorder %s23, 1
      %p146 = por %p144, %p145
      %p147 = scmp.ne.s32.totalorder %s138, %s139
      %p148 = scmp.eq.s32.totalorder %s23, 0
      %p149 = por %p147, %p148
      %p150 = scmp.ne.s32.totalorder %s138, %s139
      %p151 = scmp.eq.s32.totalorder %s24, 1
      %p152 = por %p150, %p151
      %p154 = scmp.ne.s32.totalorder %s139, %s153
      %p155 = scmp.eq.s32.totalorder %s24, 0
      %p156 = por %p154, %p155
      %s158 = sadd.s32 %s157, 1
      %p161 = scmp.eq.s32.totalorder %s18, 1
      %p162 = scmp.ne.s32.totalorder %s157, %s159
      %p163 = scmp.eq.s32.totalorder %s18, 0
      %p164 = por %p162, %p163
      %p165 = scmp.ne.s32.totalorder %s157, %s159
      %p166 = scmp.eq.s32.totalorder %s23, 1
      %p167 = por %p165, %p166
      %p168 = scmp.ne.s32.totalorder %s159, %s160
      %p169 = scmp.eq.s32.totalorder %s23, 0
      %p170 = por %p168, %p169
      %p171 = scmp.ne.s32.totalorder %s159, %s160
      %p172 = scmp.eq.s32.totalorder %s24, 1
      %p173 = por %p171, %p172
      %p175 = scmp.ne.s32.totalorder %s160, %s174
      %p176 = scmp.eq.s32.totalorder %s24, 0
      %p177 = por %p175, %p176
      %s179 = sadd.s32 %s178, 1
      %p182 = scmp.eq.s32.totalorder %s18, 1
      %p183 = scmp.ne.s32.totalorder %s178, %s180
      %p184 = scmp.eq.s32.totalorder %s18, 0
      %p185 = por %p183, %p184
      %p186 = scmp.ne.s32.totalorder %s178, %s180
      %p187 = scmp.eq.s32.totalorder %s23, 1
      %p188 = por %p186, %p187
      %p189 = scmp.ne.s32.totalorder %s180, %s181
      %p190 = scmp.eq.s32.totalorder %s23, 0
      %p191 = por %p189, %p190
      %p192 = scmp.ne.s32.totalorder %s180, %s181
      %p193 = scmp.eq.s32.totalorder %s24, 1
      %p194 = por %p192, %p193
      %p196 = scmp.ne.s32.totalorder %s181, %s195
      %p197 = scmp.eq.s32.totalorder %s24, 0
      %p198 = por %p196, %p197
      %s200 = sadd.s32 %s199, 1
      %p203 = scmp.eq.s32.totalorder %s18, 1
      %p204 = scmp.ne.s32.totalorder %s199, %s201
      %p205 = scmp.eq.s32.totalorder %s18, 0
      %p206 = por %p204, %p205
      %p207 = scmp.ne.s32.totalorder %s199, %s201
      %p208 = scmp.eq.s32.totalorder %s23, 1
      %p209 = por %p207, %p208
      %p210 = scmp.ne.s32.totalorder %s201, %s202
      %p211 = scmp.eq.s32.totalorder %s23, 0
      %p212 = por %p210, %p211
      %p213 = scmp.ne.s32.totalorder %s201, %s202
      %p214 = scmp.eq.s32.totalorder %s24, 1
      %p215 = por %p213, %p214
      %p217 = scmp.ne.s32.totalorder %s202, %s216
      %p218 = scmp.eq.s32.totalorder %s24, 0
      %p219 = por %p217, %p218
      %s220 = ssub.s32 %s18, %s25
      %p221 = scmp.eq.s32.totalorder %s220, 0
      %s223 = sadd.s32 %s222, 1
      %s224 = scalar_select %p221, %s222, %s223
      %p227 = pneg %p221
      %p228 = scmp.eq.s32.totalorder %s18, 1
      %p229 = por %p227, %p228
      %p230 = scmp.ne.s32.totalorder %s222, %s225
      %p231 = scmp.eq.s32.totalorder %s18, 0
      %p232 = por %p230, %p231
      %p233 = scmp.ne.s32.totalorder %s222, %s225
      %p234 = scmp.eq.s32.totalorder %s23, 1
      %p235 = por %p233, %p234
      %p236 = scmp.ne.s32.totalorder %s225, %s226
      %p237 = scmp.eq.s32.totalorder %s23, 0
      %p238 = por %p236, %p237
      %p239 = scmp.ne.s32.totalorder %s225, %s226
      %p240 = scmp.eq.s32.totalorder %s24, 1
      %p241 = por %p239, %p240
      %p243 = scmp.ne.s32.totalorder %s226, %s242
      %p244 = scmp.eq.s32.totalorder %s24, 0
      %p245 = por %p243, %p244
      %p246 = scmp.le.s32.totalorder 1, %s18
      %p247 = scmp.lt.s32.totalorder %s18, 3
      %p248 = pnand %p246, %p247
      %p249 = pneg %p248
      // Predicated region
      $region9: #{tpu_custom_call.1} parent=5 // pred_check
        _
      $region10: #{tpu_custom_call.1} parent=5 // pred_check_branch
        %251 = sbr.rel (%p248) target = $region12
      $region11: #{tpu_custom_call.1} parent=5 // pred_region
        %s252 = ssub.s32 %s18, 1
        // Predicated region
        $region13: #{tpu_custom_call.1} parent=11 // pred_check
          %p253 = pneg %p65
        $region14: #{tpu_custom_call.1} parent=11 // pred_check_branch
          %255 = sbr.rel (%p253) target = $region16
        $region15: #{tpu_custom_call.1} parent=11 // pred_region
          _
        $region16: #{tpu_custom_call.1} parent=11 // pred_fallthru
          _
        // Predicated region
        $region17: #{tpu_custom_call.1} parent=11 // pred_check
          %p256 = pneg %p86
        $region18: #{tpu_custom_call.1} parent=11 // pred_check_branch
          %258 = sbr.rel (%p256) target = $region20
        $region19: #{tpu_custom_call.1} parent=11 // pred_region
          _
        $region20: #{tpu_custom_call.1} parent=11 // pred_fallthru
          _
        // Predicated region
        $region21: #{tpu_custom_call.1} parent=11 // pred_check
          %p259 = pneg %p107
        $region22: #{tpu_custom_call.1} parent=11 // pred_check_branch
          %261 = sbr.rel (%p259) target = $region24
        $region23: #{tpu_custom_call.1} parent=11 // pred_region
          _
        $region24: #{tpu_custom_call.1} parent=11 // pred_fallthru
          _
        // Predicated region
        $region25: #{tpu_custom_call.1} parent=11 // pred_check
          %p262 = pneg %p128
        $region26: #{tpu_custom_call.1} parent=11 // pred_check_branch
          %264 = sbr.rel (%p262) target = $region28
        $region27: #{tpu_custom_call.1} parent=11 // pred_region
          _
        $region28: #{tpu_custom_call.1} parent=11 // pred_fallthru
          _
        // Predicated region
        $region29: #{tpu_custom_call.1} parent=11 // pred_check
          %p265 = pneg %p149
        $region30: #{tpu_custom_call.1} parent=11 // pred_check_branch
          %267 = sbr.rel (%p265) target = $region32
        $region31: #{tpu_custom_call.1} parent=11 // pred_region
          _
        $region32: #{tpu_custom_call.1} parent=11 // pred_fallthru
          _
        // Predicated region
        $region33: #{tpu_custom_call.1} parent=11 // pred_check
          %p268 = pneg %p170
        $region34: #{tpu_custom_call.1} parent=11 // pred_check_branch
          %270 = sbr.rel (%p268) target = $region36
        $region35: #{tpu_custom_call.1} parent=11 // pred_region
          _
        $region36: #{tpu_custom_call.1} parent=11 // pred_fallthru
          _
        // Predicated region
        $region37: #{tpu_custom_call.1} parent=11 // pred_check
          %p271 = pneg %p191
        $region38: #{tpu_custom_call.1} parent=11 // pred_check_branch
          %273 = sbr.rel (%p271) target = $region40
        $region39: #{tpu_custom_call.1} parent=11 // pred_region
          _
        $region40: #{tpu_custom_call.1} parent=11 // pred_fallthru
          _
        // Predicated region
        $region41: #{tpu_custom_call.1} parent=11 // pred_check
          %p274 = pneg %p212
        $region42: #{tpu_custom_call.1} parent=11 // pred_check_branch
          %276 = sbr.rel (%p274) target = $region44
        $region43: #{tpu_custom_call.1} parent=11 // pred_region
          _
        $region44: #{tpu_custom_call.1} parent=11 // pred_fallthru
          _
      $region12: #{tpu_custom_call.1} parent=5 // pred_fallthru
        _
      %p277 = scmp.lt.s32.totalorder %s18, 2
      // Predicated region
      $region45: #{tpu_custom_call.1} parent=5 // pred_check
        %p278 = pneg %p277
      $region46: #{tpu_custom_call.1} parent=5 // pred_check_branch
        %280 = sbr.rel (%p278) target = $region48
      $region47: #{tpu_custom_call.1} parent=5 // pred_region
        // Predicated region
        $region49: #{tpu_custom_call.1} parent=47 // pred_check
          %p281 = pneg %p38
        $region50: #{tpu_custom_call.1} parent=47 // pred_check_branch
          %283 = sbr.rel (%p281) target = $region52
        $region51: #{tpu_custom_call.1} parent=47 // pred_region
          %p284 = scmp.lt.s32.totalorder %s18, 1
          %s285 = scalar_select %p284, %s18, 1
          %s286 = smul.addr %s285, 2
          %s287 = scalar_lea.vmem %s0, %s286
        $region52: #{tpu_custom_call.1} parent=47 // pred_fallthru
          _
      $region48: #{tpu_custom_call.1} parent=5 // pred_fallthru
        _
      %p288 = scmp.le.s32.totalorder 1, %s18
      %p289 = scmp.lt.s32.totalorder %s18, 3
      %p290 = pnand %p288, %p289
      %p291 = pneg %p290
      // Predicated region
      $region53: #{tpu_custom_call.1} parent=5 // pred_check
        _
      $region54: #{tpu_custom_call.1} parent=5 // pred_check_branch
        %293 = sbr.rel (%p290) target = $region56
      $region55: #{tpu_custom_call.1} parent=5 // pred_region
        %s294 = ssub.s32 %s18, 1
        %p295 = scmp.lt.s32.totalorder %s23, 1
        %s296 = scalar_select %p295, %s23, 1
        %s297 = smul.addr %s296, 2
        %s298 = scalar_lea.vmem %s0, %s297
        %p299 = pneg %p44
        %p300 = pneg %p41
        %p301 = pneg %p65
        %p302 = pneg %p62
        %p303 = pneg %p86
        %p304 = pneg %p83
        %p305 = pneg %p107
        %p306 = pneg %p104
        %p307 = pneg %p128
        %p308 = pneg %p125
        %p309 = pneg %p149
        %p310 = pneg %p146
        %p311 = pneg %p170
        %p312 = pneg %p167
        %p313 = pneg %p191
        %p314 = pneg %p188
        %p315 = pneg %p212
        %p316 = pneg %p209
        %p317 = pneg %p238
        %p318 = pneg %p235
        %s319 = sand.u32 %s225, 1
        %s320 = scalar_lea.sflag [#allocation3], %s319
        %s321 = sand.u32 %s225, 1
        %s322 = smul.addr %s321, 4
        %s323 = scalar_lea.vmem [#allocation2], %s322
        %p324 = scmp.lt.s32.totalorder %s23, 1
        %s325 = scalar_select %p324, %s23, 1
        %s326 = smul.addr %s325, 2
        %s327 = scalar_lea.vmem %s0, %s326
        %v329 = vld [vmem:[%s327] sm:$0x3]
        %v330 = vld [vmem:[%s1] sm:$0xff]
        %v331 = vld [vmem:[%s1 + $0x8] sm:$0xff]
        %v332 = vld [vmem:[%s1 + $0x10] sm:$0xff]
        %v333 = vld [vmem:[%s1 + $0x18] sm:$0xff]
        %v334 = vld [vmem:[%s2] sm:$0xff]
        %v335 = vld [vmem:[%s2 + $0x8] sm:$0xff]
        %v336 = vld [vmem:[%s2 + $0x10] sm:$0xff]
        %v337 = vld [vmem:[%s2 + $0x18] sm:$0xff]
        %339 = vset.pattern.permute.xlu0 0
        %340 = vperm.xlu0 %339, %v330
        %v341 = vpop.permute.xlu0 %340
        %344 = vset.pattern.permute.xlu0 0
        %345 = vperm.xlu0 %344, %v331
        %v346 = vpop.permute.xlu0 %345
        %349 = vset.pattern.permute.xlu0 0
        %350 = vperm.xlu0 %349, %v332
        %v351 = vpop.permute.xlu0 %350
        %354 = vset.pattern.permute.xlu0 0
        %355 = vperm.xlu0 %354, %v333
        %v356 = vpop.permute.xlu0 %355
        %v358 = vlaneseq
        %v359 = vshrl.u32 %v358, 7
        %v360 = vsub.s32 0, %v359
        %v361 = vrot.slane %v329, %v360
        %v362 = vmul.f32 %v341, %v361
        %v363 = vmul.f32 %v346, %v361
        %v364 = vmul.f32 %v351, %v361
        %v365 = vmul.f32 %v356, %v361
        %367 = vset.pattern.permute.xlu0 0
        %368 = vperm.xlu0 %367, %v334
        %v369 = vpop.permute.xlu0 %368
        %372 = vset.pattern.permute.xlu0 0
        %373 = vperm.xlu0 %372, %v335
        %v374 = vpop.permute.xlu0 %373
        %377 = vset.pattern.permute.xlu0 0
        %378 = vperm.xlu0 %377, %v336
        %v379 = vpop.permute.xlu0 %378
        %382 = vset.pattern.permute.xlu0 0
        %383 = vperm.xlu0 %382, %v337
        %v384 = vpop.permute.xlu0 %383
        %v386 = vadd.f32 %v369, %v362
        %v387 = vadd.f32 %v374, %v363
        %v388 = vadd.f32 %v379, %v364
        %v389 = vadd.f32 %v384, %v365
        %390 = vset.pattern.permute.xlu0 1
        %391 = vperm.xlu0 %390, %v330
        %v392 = vpop.permute.xlu0 %391
        %394 = vset.pattern.permute.xlu0 1
        %395 = vperm.xlu0 %394, %v331
        %v396 = vpop.permute.xlu0 %395
        %398 = vset.pattern.permute.xlu0 1
        %399 = vperm.xlu0 %398, %v332
        %v400 = vpop.permute.xlu0 %399
        %402 = vset.pattern.permute.xlu0 1
        %403 = vperm.xlu0 %402, %v333
        %v404 = vpop.permute.xlu0 %403
        %v406 = vlaneseq
        %v407 = vshrl.u32 %v406, 7
        %v408 = vsub.s32 1, %v407
        %v409 = vrot.slane %v329, %v408
        %v410 = vmul.f32 %v392, %v409
        %v411 = vmul.f32 %v396, %v409
        %v412 = vmul.f32 %v400, %v409
        %v413 = vmul.f32 %v404, %v409
        %v414 = vadd.f32 %v386, %v410
        %v415 = vadd.f32 %v387, %v411
        %v416 = vadd.f32 %v388, %v412
        %v417 = vadd.f32 %v389, %v413
        %v418 = vmax.f32 %v414, 0.0
        %v419 = vmax.f32 %v415, 0.0
        %v420 = vmax.f32 %v416, 0.0
        %v421 = vmax.f32 %v417, 0.0
        %v422 = vld [vmem:[%s3] sm:$0xf]
        %v423 = vld [vmem:[%s3 + $0x4] sm:$0xf]
        %v424 = vld [vmem:[%s3 + $0x8] sm:$0xf]
        %v425 = vld [vmem:[%s3 + $0xc] sm:$0xf]
        %v426 = vpack.c.bf16 %v419, %v418
        %v427 = vpack.c.bf16 %v421, %v420
        %v428 = vld [vmem:[%s4] sm:$0xff]
        %v429 = vld [vmem:[%s4 + $0x8] sm:$0xff]
        %v430 = vld [vmem:[%s4 + $0x10] sm:$0xff]
        %v431 = vld [vmem:[%s4 + $0x18] sm:$0xff]
        %433 = vset.pattern.permute.xlu0 0
        %434 = vperm.xlu0 %433, %v428
        %v435 = vpop.permute.xlu0 %434
        %438 = vset.pattern.permute.xlu0 0
        %439 = vperm.xlu0 %438, %v429
        %v440 = vpop.permute.xlu0 %439
        %443 = vset.pattern.permute.xlu0 0
        %444 = vperm.xlu0 %443, %v430
        %v445 = vpop.permute.xlu0 %444
        %448 = vset.pattern.permute.xlu0 0
        %449 = vperm.xlu0 %448, %v431
        %v450 = vpop.permute.xlu0 %449
        %v456 = vunpack.c.l.b16 %v422
        %v457 = vunpack.c.l.b16 %v423
        %v458 = vunpack.c.l.b16 %v424
        %v459 = vunpack.c.l.b16 %v425
        %v460 = vpack.c.b16 %v457, %v456
        %v461 = vpack.c.b16 %v459, %v458
        %vm462 = vcmask 261120
        %v464 = vsel %vm462, %v460, 0
        %v467 = vsel %vm462, %v461, 0
        %469 = vmatprep.subr.bf16.mxu0 0
        %470 = vmatpush1.bf16.msra.mxu0 %v426
        %471 = vmatprep.subr.bf16.mxu0 0
        %472 = vmatpush1.bf16.msra.mxu0 %v427
        %473 = vmatprep.subr.bf16.mxu0 0
        %474 = vmatpush1.bf16.msra.mxu0 0
        %475 = vmatprep.subr.bf16.mxu0 0
        %476 = vmatpush1.bf16.msra.mxu0 0
        %477 = vmatprep.subr.bf16.mxu0 0
        %478 = vmatpush1.bf16.msra.mxu0 0
        %479 = vmatprep.subr.bf16.mxu0 0
        %480 = vmatpush1.bf16.msra.mxu0 0
        %481 = vmatprep.subr.bf16.mxu0 0
        %482 = vmatpush1.bf16.msra.mxu0 0
        %483 = vmatprep.subr.bf16.mxu0 0
        %484 = vmatpush1.bf16.msra.mxu0 0
        %485 = vmatprep.subr.bf16.mxu0 0
        %486 = vmatpush1.bf16.msra.mxu0 0
        %487 = vmatprep.subr.bf16.mxu0 0
        %488 = vmatpush1.bf16.msra.mxu0 0
        %489 = vmatprep.subr.bf16.mxu0 0
        %490 = vmatpush1.bf16.msra.mxu0 0
        %491 = vmatprep.subr.bf16.mxu0 0
        %492 = vmatpush1.bf16.msra.mxu0 0
        %493 = vmatprep.subr.bf16.mxu0 0
        %494 = vmatpush1.bf16.msra.mxu0 0
        %495 = vmatprep.subr.bf16.mxu0 0
        %496 = vmatpush1.bf16.msra.mxu0 0
        %497 = vmatprep.subr.bf16.mxu0 0
        %498 = vmatpush1.bf16.msra.mxu0 0
        %499 = vmatprep.subr.bf16.mxu0 0
        %500 = vmatpush1.bf16.msra.mxu0 0
        %501 = vmatprep.mubr.bf16.mxu0 0
        %502 = vmatmul.mubr.bf16.gmra.mrb[0].mxu0 %v464
        %v503 = vpop.f32.mrb[0].mxu0
        %v504 = vadd.f32 %v435, %v503
        %v505 = vpop.f32.mrb[0].mxu0
        %v506 = vpop.f32.mrb[0].mxu0
        %v507 = vadd.f32 %v440, %v506
        %v508 = vpop.f32.mrb[0].mxu0
        %509 = vmatprep.mubr.bf16.mxu0 0
        %510 = vmatmul.mubr.bf16.gmra.mrb[0].mxu0 %v467
        %v511 = vpop.f32.mrb[0].mxu0
        %v512 = vadd.f32 %v445, %v511
        %v513 = vpop.f32.mrb[0].mxu0
        %v514 = vpop.f32.mrb[0].mxu0
        %v515 = vadd.f32 %v450, %v514
        %v516 = vpop.f32.mrb[0].mxu0
        %517 = vdwg.mxu0
        %v518 = vmax.f32 %v504, 0.0
        %v519 = vmax.f32 %v507, 0.0
        %v520 = vmax.f32 %v512, 0.0
        %v521 = vmax.f32 %v515, 0.0
        %v522 = vld [vmem:[%s5] sm:$0xf]
        %v523 = vld [vmem:[%s5 + $0x4] sm:$0xf]
        %v524 = vld [vmem:[%s5 + $0x8] sm:$0xf]
        %v525 = vld [vmem:[%s5 + $0xc] sm:$0xf]
        %v526 = vpack.c.bf16 %v519, %v518
        %v527 = vpack.c.bf16 %v521, %v520
        %v528 = vld [vmem:[%s6] sm:$0xff]
        %v529 = vld [vmem:[%s6 + $0x8] sm:$0xff]
        %v530 = vld [vmem:[%s6 + $0x10] sm:$0xff]
        %v531 = vld [vmem:[%s6 + $0x18] sm:$0xff]
        %533 = vset.pattern.permute.xlu0 0
        %534 = vperm.xlu0 %533, %v528
        %v535 = vpop.permute.xlu0 %534
        %538 = vset.pattern.permute.xlu0 0
        %539 = vperm.xlu0 %538, %v529
        %v540 = vpop.permute.xlu0 %539
        %543 = vset.pattern.permute.xlu0 0
        %544 = vperm.xlu0 %543, %v530
        %v545 = vpop.permute.xlu0 %544
        %548 = vset.pattern.permute.xlu0 0
        %549 = vperm.xlu0 %548, %v531
        %v550 = vpop.permute.xlu0 %549
        %v556 = vunpack.c.l.b16 %v522
        %v557 = vunpack.c.l.b16 %v523
        %v558 = vunpack.c.l.b16 %v524
        %v559 = vunpack.c.l.b16 %v525
        %v560 = vpack.c.b16 %v557, %v556
        %v561 = vpack.c.b16 %v559, %v558
        %v563 = vsel %vm462, %v560, 0
        %v566 = vsel %vm462, %v561, 0
        %568 = vmatprep.subr.bf16.mxu0 0
        %569 = vmatpush1.bf16.msra.mxu0 %v526
        %570 = vmatprep.subr.bf16.mxu0 0
        %571 = vmatpush1.bf16.msra.mxu0 %v527
        %572 = vmatprep.subr.bf16.mxu0 0
        %573 = vmatpush1.bf16.msra.mxu0 0
        %574 = vmatprep.subr.bf16.mxu0 0
        %575 = vmatpush1.bf16.msra.mxu0 0
        %576 = vmatprep.subr.bf16.mxu0 0
        %577 = vmatpush1.bf16.msra.mxu0 0
        %578 = vmatprep.subr.bf16.mxu0 0
        %579 = vmatpush1.bf16.msra.mxu0 0
        %580 = vmatprep.subr.bf16.mxu0 0
        %581 = vmatpush1.bf16.msra.mxu0 0
        %582 = vmatprep.subr.bf16.mxu0 0
        %583 = vmatpush1.bf16.msra.mxu0 0
        %584 = vmatprep.subr.bf16.mxu0 0
        %585 = vmatpush1.bf16.msra.mxu0 0
        %586 = vmatprep.subr.bf16.mxu0 0
        %587 = vmatpush1.bf16.msra.mxu0 0
        %588 = vmatprep.subr.bf16.mxu0 0
        %589 = vmatpush1.bf16.msra.mxu0 0
        %590 = vmatprep.subr.bf16.mxu0 0
        %591 = vmatpush1.bf16.msra.mxu0 0
        %592 = vmatprep.subr.bf16.mxu0 0
        %593 = vmatpush1.bf16.msra.mxu0 0
        %594 = vmatprep.subr.bf16.mxu0 0
        %595 = vmatpush1.bf16.msra.mxu0 0
        %596 = vmatprep.subr.bf16.mxu0 0
        %597 = vmatpush1.bf16.msra.mxu0 0
        %598 = vmatprep.subr.bf16.mxu0 0
        %599 = vmatpush1.bf16.msra.mxu0 0
        %600 = vmatprep.mubr.bf16.mxu0 0
        %601 = vmatmul.mubr.bf16.gmra.mrb[0].mxu0 %v563
        %v602 = vpop.f32.mrb[0].mxu0
        %v603 = vadd.f32 %v535, %v602
        %v604 = vpop.f32.mrb[0].mxu0
        %v605 = vpop.f32.mrb[0].mxu0
        %v606 = vadd.f32 %v540, %v605
        %v607 = vpop.f32.mrb[0].mxu0
        %608 = vmatprep.mubr.bf16.mxu0 0
        %609 = vmatmul.mubr.bf16.gmra.mrb[0].mxu0 %v566
        %v610 = vpop.f32.mrb[0].mxu0
        %v611 = vadd.f32 %v545, %v610
        %v612 = vpop.f32.mrb[0].mxu0
        %v613 = vpop.f32.mrb[0].mxu0
        %v614 = vadd.f32 %v550, %v613
        %v615 = vpop.f32.mrb[0].mxu0
        %616 = vdwg.mxu0
        %v617 = vmax.f32 %v603, 0.0
        %v618 = vmax.f32 %v606, 0.0
        %v619 = vmax.f32 %v611, 0.0
        %v620 = vmax.f32 %v614, 0.0
        %v621 = vld [vmem:[%s7] sm:$0x3]
        %v622 = vpack.c.bf16 %v618, %v617
        %v623 = vpack.c.bf16 %v620, %v619
        %v624 = vld [vmem:[%s8] sm:$0xf]
        %626 = vset.pattern.permute.xlu0 0
        %627 = vperm.xlu0 %626, %v624
        %v628 = vpop.permute.xlu0 %627
        %v631 = vsel %vm462, %v621, 0
        %633 = vmatprep.subr.bf16.mxu0 0
        %634 = vmatpush1.bf16.msra.mxu0 %v622
        %635 = vmatprep.subr.bf16.mxu0 0
        %636 = vmatpush1.bf16.msra.mxu0 %v623
        %637 = vmatprep.subr.bf16.mxu0 0
        %638 = vmatpush1.bf16.msra.mxu0 0
        %639 = vmatprep.subr.bf16.mxu0 0
        %640 = vmatpush1.bf16.msra.mxu0 0
        %641 = vmatprep.subr.bf16.mxu0 0
        %642 = vmatpush1.bf16.msra.mxu0 0
        %643 = vmatprep.subr.bf16.mxu0 0
        %644 = vmatpush1.bf16.msra.mxu0 0
        %645 = vmatprep.subr.bf16.mxu0 0
        %646 = vmatpush1.bf16.msra.mxu0 0
        %647 = vmatprep.subr.bf16.mxu0 0
        %648 = vmatpush1.bf16.msra.mxu0 0
        %649 = vmatprep.subr.bf16.mxu0 0
        %650 = vmatpush1.bf16.msra.mxu0 0
        %651 = vmatprep.subr.bf16.mxu0 0
        %652 = vmatpush1.bf16.msra.mxu0 0
        %653 = vmatprep.subr.bf16.mxu0 0
        %654 = vmatpush1.bf16.msra.mxu0 0
        %655 = vmatprep.subr.bf16.mxu0 0
        %656 = vmatpush1.bf16.msra.mxu0 0
        %657 = vmatprep.subr.bf16.mxu0 0
        %658 = vmatpush1.bf16.msra.mxu0 0
        %659 = vmatprep.subr.bf16.mxu0 0
        %660 = vmatpush1.bf16.msra.mxu0 0
        %661 = vmatprep.subr.bf16.mxu0 0
        %662 = vmatpush1.bf16.msra.mxu0 0
        %663 = vmatprep.subr.bf16.mxu0 0
        %664 = vmatpush1.bf16.msra.mxu0 0
        %665 = vmatprep.mubr.bf16.mxu0 0
        %666 = vmatmul.mubr.bf16.gmra.mrb[0].mxu0 %v631
        %v667 = vpop.f32.mrb[0].mxu0
        %v668 = vadd.f32 %v628, %v667
        %v669 = vpop.f32.mrb[0].mxu0
        %v670 = vpop.f32.mrb[0].mxu0
        %v671 = vpop.f32.mrb[0].mxu0
        %672 = vdwg.mxu0
        %vm673 = vcmask 1043456
        %v674 = vsel %vm673, %v668, -inf
        %v675 = vrot.slane %v674, 4
        %v676 = vmax.f32 %v674, %v675
        %v677 = vrot.slane %v676, 2
        %v678 = vmax.f32 %v676, %v677
        %v679 = vrot.slane %v678, 1
        %v680 = vmax.f32 %v678, %v679
        %v681 = vsub.f32 %v668, %v680
        %v682 = vmul.f32 %v681, 1.442695
        %v683 = vpow.pop %v682
        %v684 = vsel %vm673, %v683, 0.0
        %v685 = vrot.slane %v684, 4
        %v686 = vadd.f32 %v684, %v685
        %v687 = vrot.slane %v686, 2
        %v688 = vadd.f32 %v686, %v687
        %v689 = vrot.slane %v688, 1
        %v690 = vadd.f32 %v688, %v689
        %v691 = vlog2.pop %v690
        %v692 = vmul.f32 %v691, 0.6931472
        %v693 = vsub.f32 %v681, %v692
        %694 = vst [vmem:[%s323] sm:$0xf] %v693
        %s695 = sand.u32 %s225, 1
        %s696 = scalar_lea.sflag [#allocation3], %s695
        %s697 = sand.u32 %s225, 1
        %s698 = smul.addr %s697, 4
        %s699 = scalar_lea.vmem [#allocation2], %s698
        // Predicated region
        $region57: #{tpu_custom_call.1} parent=55 // pred_check
          %p700 = pneg %p235
        $region58: #{tpu_custom_call.1} parent=55 // pred_check_branch
          %702 = sbr.rel (%p700) target = $region60
        $region59: #{tpu_custom_call.1} parent=55 // pred_region
          %s704 = ssub.s32 64, 64
          %705 = vsyncadd %s696, %s704
          %s706 = smul.addr %s23, 64
          %s707 = scalar_lea.hbm %s9, %s706
          %s709 = sshll.u32 %s699, 4
          %s710 = int_to_ptr.vmem [resolvable:$true] %s709
          %712 = dma.vmem_to_hbm [thread:$0]  %s710, 64, %s707, %s696
        $region60: #{tpu_custom_call.1} parent=55 // pred_fallthru
          _
      $region56: #{tpu_custom_call.1} parent=5 // pred_fallthru
        _
      %p713 = scmp.le.s32.totalorder 2, %s18
      // Predicated region
      $region61: #{tpu_custom_call.1} parent=5 // pred_check
        %p714 = pneg %p713
      $region62: #{tpu_custom_call.1} parent=5 // pred_check_branch
        %716 = sbr.rel (%p714) target = $region64
      $region63: #{tpu_custom_call.1} parent=5 // pred_region
        %s717 = ssub.s32 %s18, 2
        // Predicated region
        $region65: #{tpu_custom_call.1} parent=63 // pred_check
          %p718 = pneg %p241
        $region66: #{tpu_custom_call.1} parent=63 // pred_check_branch
          %720 = sbr.rel (%p718) target = $region68
        $region67: #{tpu_custom_call.1} parent=63 // pred_region
          %s721 = sand.u32 %s226, 1
          %s722 = scalar_lea.sflag [#allocation3], %s721
          %s723 = sand.u32 %s226, 1
          %s724 = smul.addr %s723, 4
          %s725 = scalar_lea.vmem [#allocation2], %s724
          %726 = dma.done %s722, 64
        $region68: #{tpu_custom_call.1} parent=63 // pred_fallthru
          _
      $region64: #{tpu_custom_call.1} parent=5 // pred_fallthru
        _
    $region6: #{tpu_custom_call.1} parent=1 // loop_footer
      %s22 = sadd.s32 1, %s18
    $region7: #{tpu_custom_call.1} parent=1 // loop_footer_branch
      %17 = sbr.rel target = $region3
    $region8: #{tpu_custom_call.1} parent=1 // loop_exit
      _
    %727 = vsyncpa [#allocation3], 1
    %s728 = scalar_lea.sflag [#allocation3], 1
    %729 = vsyncpa %s728, 1

</llo_original>
